<compile_context>
chip_gen: v6e
topology: v6e:2x2x1
jax: 0.10.0
libtpu: 0.0.40
codegen_flags: <defaults>
</compile_context>

<pallas_src>
import functools

import jax
import jax.numpy as jnp
import numpy as np
from jax.experimental import pallas as pl
from jax.experimental.pallas import tpu as pltpu


def _vmem_budgets():
    """(scoped vmem limit to request, live-data budget used to pick the tile)."""
    try:
        cap = int(pltpu.get_tpu_info().vmem_capacity_bytes)
    except Exception:
        cap = 64 * 1024 * 1024  # conservative default: v7x per-TC VMEM
    vmem_limit = min(cap * 3 // 4, 96 * 1024 * 1024)  # leave headroom vs physical
    tile_budget = vmem_limit // 2                     # double-buffering headroom
    return vmem_limit, tile_budget


def _pick_tile_b(batch, dim, in_itemsize, tile_budget):
    """Largest batch tile (multiple of 8) whose footprint fits the VMEM budget."""
    # 2 inputs x 2 pipeline buffers of the input dtype + ~8 live [TB, D] f32 temps.
    per_row = 2 * 2 * dim * in_itemsize + 8 * dim * 4
    tb = (tile_budget // per_row) // 8 * 8
    tb = max(8, min(tb, 1024))
    b_up = ((batch + 7) // 8) * 8
    return int(min(tb, b_up))


def _dino_loss_kernel(temp_ref, student_ref, teacher_ref, center_ref,
                      loss_ref, tsum_ref, *, inv_student_temp, batch_size):
    # Scalar path: one divide on the scalar unit, hoisted out of the vector math.
    inv_temp = 1.0 / temp_ref[0, 0]

    student = student_ref[...].astype(jnp.float32)           # [TB, D]
    teacher = teacher_ref[...].astype(jnp.float32)           # [TB, D]
    center = center_ref[...].astype(jnp.float32)             # [1, D]
    tb = teacher.shape[0]

    # ---- teacher softmax numerator (normalization folded into the CE below) ----
    t = (teacher - center) * inv_temp
    t_max = jnp.max(t, axis=-1, keepdims=True)
    t_exp = jnp.exp(t - t_max)                                # unnormalized softmax
    t_z = jnp.sum(t_exp, axis=-1, keepdims=True)              # [TB, 1]

    # ---- student log-softmax over last dim ----
    s = student * jnp.float32(inv_student_temp)
    s_max = jnp.max(s, axis=-1, keepdims=True)
    s_shift = s - s_max
    s_lse = jnp.log(jnp.sum(jnp.exp(s_shift), axis=-1, keepdims=True))
    s_logsoft = s_shift - s_lse

    # ---- cross entropy: loss = -(sum_d t_exp * log_softmax(student)) / Z ----
    # Only a [TB, 1] reciprocal remains (the [TB, D] normalize was folded away).
    ce = jnp.sum(t_exp * s_logsoft, axis=-1, keepdims=True)   # [TB, 1]
    loss_ref[...] = -(ce * pl.reciprocal(t_z, approx=False))

    # ---- per-tile partial teacher sum for the center EMA (finished in wrapper) ----
    # Mask padded rows of the (possibly) ragged last tile so the sum is unbiased.
    row = pl.program_id(0) * tb + jax.lax.broadcasted_iota(jnp.int32, (tb, 1), 0)
    valid = row < batch_size
    t_masked = jnp.where(valid, teacher, 0.0)
    tsum_ref[...] = jnp.sum(t_masked, axis=0, keepdims=True)[None]   # [1, 1, D]


def dino_loss_forward(student_output, teacher_output, center, temp, *,
                      student_temp=0.1, center_momentum=0.9, tile_b=None):
    """Returns (loss[B], new_center[1, D])."""
    assert student_output.shape == teacher_output.shape
    B, D = student_output.shape
    in_itemsize = jnp.dtype(student_output.dtype).itemsize
    vmem_limit, tile_budget = _vmem_budgets()
    if tile_b is None:
        tile_b = _pick_tile_b(B, D, in_itemsize, tile_budget)
    num_tiles = pl.cdiv(B, tile_b)

    temp_arr = jnp.asarray(temp, jnp.float32).reshape(1, 1)

    kernel = functools.partial(
        _dino_loss_kernel,
        inv_student_temp=1.0 / float(student_temp),
        batch_size=B,
    )

    cost = pl.CostEstimate(
        flops=int(12 * B * D),
        transcendentals=int(2 * B * D),
        bytes_accessed=int(2 * B * D * in_itemsize + D * 4 + B * 4 + num_tiles * D * 4),
    )

    loss2d, tile_sums = pl.pallas_call(
        kernel,
        grid=(num_tiles,),
        in_specs=[
            pl.BlockSpec((1, 1), lambda i: (0, 0),
                         memory_space=pltpu.MemorySpace.SMEM),      # teacher temp
            pl.BlockSpec((tile_b, D), lambda i: (i, 0)),            # student tile
            pl.BlockSpec((tile_b, D), lambda i: (i, 0)),            # teacher tile
            pl.BlockSpec((1, D), lambda i: (0, 0)),                 # center (resident)
        ],
        out_specs=(
            pl.BlockSpec((tile_b, 1), lambda i: (i, 0)),            # per-row loss
            pl.BlockSpec((1, 1, D), lambda i: (i, 0, 0)),           # per-tile teacher sums
        ),
        out_shape=(
            jax.ShapeDtypeStruct((B, 1), jnp.float32),
            jax.ShapeDtypeStruct((num_tiles, 1, D), jnp.float32),
        ),
        compiler_params=pltpu.CompilerParams(
            dimension_semantics=("parallel",),
            vmem_limit_bytes=int(vmem_limit),
        ),
        cost_estimate=cost,
    )(temp_arr, student_output, teacher_output, center)

    loss = loss2d[:, 0]

    # Finish the center EMA in JAX (tiny [num_tiles, D] reduction) so the batch
    # grid axis stays "parallel" inside the kernel.
    batch_center = jnp.sum(tile_sums, axis=0) / jnp.float32(B)      # (1, D)
    # TODO(synk): dist.all_reduce / world_size > 1 not emitted (single-device).
    new_center = (center.astype(jnp.float32) * center_momentum
                  + batch_center * (1.0 - center_momentum))
    return loss, new_center


class DINOLossPallas:
    """JAX/Pallas port of DINOLoss. forward returns loss[B] and updates .center."""

    def __init__(self, out_dim, nepochs, warmup_teacher_temp=0.04, teacher_temp=0.04,
                 warmup_teacher_temp_epochs=0, student_temp=0.1, center_momentum=0.9):
        self.out_dim = out_dim
        self.student_temp = float(student_temp)
        self.center_momentum = float(center_momentum)
        self.center = jnp.zeros((1, out_dim), dtype=jnp.float32)
        self.teacher_temp_schedule = np.concatenate((
            np.linspace(warmup_teacher_temp, teacher_temp, warmup_teacher_temp_epochs),
            np.ones(nepochs - warmup_teacher_temp_epochs) * teacher_temp,
        )).astype(np.float32)

    def forward(self, student_output, teacher_output, epoch):
        temp = float(self.teacher_temp_schedule[int(epoch)])
        loss, new_center = dino_loss_forward(
            student_output, teacher_output, self.center, temp,
            student_temp=self.student_temp, center_momentum=self.center_momentum)
        self.center = new_center   # buffer update (register_buffer 'center')
        return loss


def _reference(student, teacher, center, temp, student_temp, center_momentum):
    s = student.astype(jnp.float32) / student_temp
    t = jax.nn.softmax((teacher.astype(jnp.float32) - center) / temp, axis=-1)
    loss = jnp.sum(-t * jax.nn.log_softmax(s, axis=-1), axis=-1)
    batch_center = jnp.sum(teacher.astype(jnp.float32), axis=0, keepdims=True) / teacher.shape[0]
    new_center = center * center_momentum + batch_center * (1.0 - center_momentum)
    return loss, new_center


if __name__ == "__main__":
    key = jax.random.PRNGKey(0)
    k1, k2, k3, k4, k5 = jax.random.split(key, 5)

    # --- case 1: module path (auto tile size) ---
    B, D = 16, 256
    student = jax.random.normal(k1, (B, D), dtype=jnp.float32)
    teacher = jax.random.normal(k2, (B, D), dtype=jnp.float32)

    module = DINOLossPallas(out_dim=D, nepochs=10, warmup_teacher_temp=0.04,
                            teacher_temp=0.07, warmup_teacher_temp_epochs=3,
                            student_temp=0.1, center_momentum=0.9)
    epoch = 2
    center0 = module.center
    loss = module.forward(student, teacher, epoch)
    jax.block_until_ready((loss, module.center))

    temp = float(module.teacher_temp_schedule[epoch])
    ref_loss, ref_center = _reference(student, teacher, center0, temp,
                                      module.student_temp, module.center_momentum)
    assert jnp.allclose(loss, ref_loss, atol=1e-4, rtol=1e-4), (loss, ref_loss)
    assert jnp.allclose(module.center, ref_center, atol=1e-5, rtol=1e-5)

    # --- case 2: multi-tile grid with a ragged (padded) last batch tile ---
    B2, D2 = 12, 128
    student2 = jax.random.normal(k3, (B2, D2), dtype=jnp.float32)
    teacher2 = jax.random.normal(k4, (B2, D2), dtype=jnp.float32)
    center2 = 0.1 * jax.random.normal(k5, (1, D2), dtype=jnp.float32)
    loss2, new_center2 = dino_loss_forward(student2, teacher2, center2, 0.05,
                                           student_temp=0.1, center_momentum=0.9,
                                           tile_b=8)
    jax.block_until_ready((loss2, new_center2))
    ref_loss2, ref_center2 = _reference(student2, teacher2, center2, 0.05, 0.1, 0.9)
    assert jnp.allclose(loss2, ref_loss2, atol=1e-4, rtol=1e-4), (loss2, ref_loss2)
    assert jnp.allclose(new_center2, ref_center2, atol=1e-5, rtol=1e-5)

    print("KERNEL_OK")
</pallas_src>

<mosaic_0001>
module attributes {stable_mosaic.version = 11 : i64} {
  func.func @_dino_loss_kernel(%arg0: i32, %arg1: memref<1x1xf32, #tpu.memory_space<smem>>, %arg2: memref<16x256xf32, #tpu.memory_space<vmem>>, %arg3: memref<16x256xf32, #tpu.memory_space<vmem>>, %arg4: memref<1x256xf32, #tpu.memory_space<vmem>>, %arg5: memref<16x1xf32, #tpu.memory_space<vmem>>, %arg6: memref<1x1x256xf32, #tpu.memory_space<vmem>>) attributes {dimension_semantics = [#tpu.dimension_semantics<parallel>], iteration_bounds = array<i64: 1>, scalar_prefetch = 0 : i64, scratch_operands = 0 : i64, tpu.core_type = #tpu.core_type<tc>, window_params = [{transform_indices = @transform_0, window_bounds = array<i64: 1, 1>}, {transform_indices = @transform_1, window_bounds = array<i64: 16, 256>}, {transform_indices = @transform_2, window_bounds = array<i64: 16, 256>}, {pipeline_mode = #tpu.pipeline_mode<synchronous>, transform_indices = @transform_3, window_bounds = array<i64: 1, 256>}, {transform_indices = @transform_4, window_bounds = array<i64: 16, 1>}, {transform_indices = @transform_5, window_bounds = array<i64: 1, 1, 256>}]} {
    %c0 = arith.constant 0 : index
    %c0_0 = arith.constant 0 : index
    %0 = memref.load %arg1[%c0, %c0_0] : memref<1x1xf32, #tpu.memory_space<smem>>
    %cst = arith.constant 1.000000e+00 : f32
    %1 = arith.divf %cst, %0 : f32
    %c0_1 = arith.constant 0 : index
    %c0_2 = arith.constant 0 : index
    %2 = vector.load %arg2[%c0_1, %c0_2] : memref<16x256xf32, #tpu.memory_space<vmem>>, vector<16x256xf32>
    %c0_3 = arith.constant 0 : index
    %c0_4 = arith.constant 0 : index
    %3 = vector.load %arg3[%c0_3, %c0_4] : memref<16x256xf32, #tpu.memory_space<vmem>>, vector<16x256xf32>
    %c0_5 = arith.constant 0 : index
    %c0_6 = arith.constant 0 : index
    %4 = vector.load %arg4[%c0_5, %c0_6] : memref<1x256xf32, #tpu.memory_space<vmem>>, vector<1x256xf32>
    %5 = vector.broadcast %4 : vector<1x256xf32> to vector<16x256xf32>
    %6 = arith.subf %3, %5 : vector<16x256xf32>
    %7 = vector.broadcast %1 : f32 to vector<16x256xf32>
    %8 = arith.mulf %6, %7 : vector<16x256xf32>
    %cst_7 = arith.constant dense<0xFF800000> : vector<16xf32>
    %9 = vector.multi_reduction <maximumf>, %8, %cst_7 [1] : vector<16x256xf32> to vector<16xf32>
    %10 = vector.shape_cast %9 : vector<16xf32> to vector<16x1xf32>
    %11 = vector.broadcast %10 : vector<16x1xf32> to vector<16x256xf32>
    %12 = arith.subf %8, %11 : vector<16x256xf32>
    %13 = math.exp %12 : vector<16x256xf32>
    %cst_8 = arith.constant dense<0.000000e+00> : vector<16xf32>
    %14 = vector.multi_reduction <add>, %13, %cst_8 [1] : vector<16x256xf32> to vector<16xf32>
    %15 = vector.shape_cast %14 : vector<16xf32> to vector<16x1xf32>
    %cst_9 = arith.constant 1.000000e+01 : f32
    %16 = vector.broadcast %cst_9 : f32 to vector<16x256xf32>
    %17 = arith.mulf %2, %16 : vector<16x256xf32>
    %cst_10 = arith.constant dense<0xFF800000> : vector<16xf32>
    %18 = vector.multi_reduction <maximumf>, %17, %cst_10 [1] : vector<16x256xf32> to vector<16xf32>
    %19 = vector.shape_cast %18 : vector<16xf32> to vector<16x1xf32>
    %20 = vector.broadcast %19 : vector<16x1xf32> to vector<16x256xf32>
    %21 = arith.subf %17, %20 : vector<16x256xf32>
    %22 = math.exp %21 : vector<16x256xf32>
    %cst_11 = arith.constant dense<0.000000e+00> : vector<16xf32>
    %23 = vector.multi_reduction <add>, %22, %cst_11 [1] : vector<16x256xf32> to vector<16xf32>
    %24 = vector.shape_cast %23 : vector<16xf32> to vector<16x1xf32>
    %25 = math.log %24 : vector<16x1xf32>
    %26 = vector.broadcast %25 : vector<16x1xf32> to vector<16x256xf32>
    %27 = arith.subf %21, %26 : vector<16x256xf32>
    %28 = arith.mulf %13, %27 : vector<16x256xf32>
    %cst_12 = arith.constant dense<0.000000e+00> : vector<16xf32>
    %29 = vector.multi_reduction <add>, %28, %cst_12 [1] : vector<16x256xf32> to vector<16xf32>
    %30 = vector.shape_cast %29 : vector<16xf32> to vector<16x1xf32>
    %31 = tpu.reciprocal %15 : vector<16x1xf32> -> vector<16x1xf32>
    %32 = arith.mulf %30, %31 : vector<16x1xf32>
    %cst_13 = arith.constant 0.000000e+00 : f32
    %33 = vector.broadcast %cst_13 : f32 to vector<16x1xf32>
    %34 = arith.subf %33, %32 : vector<16x1xf32>
    %c0_14 = arith.constant 0 : index
    %c0_15 = arith.constant 0 : index
    %35 = vector.load %arg5[%c0_14, %c0_15] : memref<16x1xf32, #tpu.memory_space<vmem>>, vector<16x1xf32>
    tpu.vector_store %arg5[%c0_14, %c0_15], %34 {strides = array<i32>} : memref<16x1xf32, #tpu.memory_space<vmem>>, vector<16x1xf32>,
    %c16_i32 = arith.constant 16 : i32
    %36 = arith.muli %arg0, %c16_i32 : i32
    %37 = tpu.iota {dimensions = array<i32: 0>} : vector<16x1xi32>
    %38 = vector.broadcast %36 : i32 to vector<16x1xi32>
    %39 = arith.addi %38, %37 : vector<16x1xi32>
    %c16_i32_16 = arith.constant 16 : i32
    %40 = vector.broadcast %c16_i32_16 : i32 to vector<16x1xi32>
    %41 = arith.cmpi slt, %39, %40 : vector<16x1xi32>
    %cst_17 = arith.constant 0.000000e+00 : f32
    %42 = vector.shape_cast %41 : vector<16x1xi1> to vector<16x1xi1>
    %43 = vector.broadcast %42 : vector<16x1xi1> to vector<16x256xi1>
    %44 = vector.broadcast %cst_17 : f32 to vector<16x256xf32>
    %45 = arith.select %43, %3, %44 : vector<16x256xi1>, vector<16x256xf32>
    %cst_18 = arith.constant dense<0.000000e+00> : vector<256xf32>
    %46 = vector.multi_reduction <add>, %45, %cst_18 [0] : vector<16x256xf32> to vector<256xf32>
    %47 = vector.shape_cast %46 : vector<256xf32> to vector<1x256xf32>
    %48 = vector.shape_cast %47 : vector<1x256xf32> to vector<1x1x256xf32>
    %c0_19 = arith.constant 0 : index
    %c0_20 = arith.constant 0 : index
    %c0_21 = arith.constant 0 : index
    %49 = vector.load %arg6[%c0_19, %c0_20, %c0_21] : memref<1x1x256xf32, #tpu.memory_space<vmem>>, vector<1x1x256xf32>
    tpu.vector_store %arg6[%c0_19, %c0_20, %c0_21], %48 {strides = array<i32>} : memref<1x1x256xf32, #tpu.memory_space<vmem>>, vector<1x1x256xf32>,
    return
  }
  func.func @transform_0(%arg0: i32) -> (i32, i32) {
    %c0_i32 = arith.constant 0 : i32
    %c0_i32_0 = arith.constant 0 : i32
    %c0_i32_1 = arith.constant 0 : i32
    return %c0_i32, %c0_i32_0 : i32, i32
  }
  func.func @transform_1(%arg0: i32) -> (i32, i32) {
    %c0_i32 = arith.constant 0 : i32
    %c0_i32_0 = arith.constant 0 : i32
    return %arg0, %c0_i32 : i32, i32
  }
  func.func @transform_2(%arg0: i32) -> (i32, i32) {
    %c0_i32 = arith.constant 0 : i32
    %c0_i32_0 = arith.constant 0 : i32
    return %arg0, %c0_i32 : i32, i32
  }
  func.func @transform_3(%arg0: i32) -> (i32, i32) {
    %c0_i32 = arith.constant 0 : i32
    %c0_i32_0 = arith.constant 0 : i32
    %c0_i32_1 = arith.constant 0 : i32
    return %c0_i32, %c0_i32_0 : i32, i32
  }
  func.func @transform_4(%arg0: i32) -> (i32, i32) {
    %c0_i32 = arith.constant 0 : i32
    %c0_i32_0 = arith.constant 0 : i32
    return %arg0, %c0_i32 : i32, i32
  }
  func.func @transform_5(%arg0: i32) -> (i32, i32, i32) {
    %c0_i32 = arith.constant 0 : i32
    %c0_i32_0 = arith.constant 0 : i32
    %c0_i32_1 = arith.constant 0 : i32
    return %arg0, %c0_i32, %c0_i32_0 : i32, i32, i32
  }
}

</mosaic_0001>

<llo_original>
// kernel: tpu_custom_call.1
$region0: #{tpu_custom_call.1}
  #allocation0 [shape = 'u32[]', space=smem, size = 0x4, offset = 0x4, fixed_abs, tag = 'smem constant byte address 0x4 - core index']
  #allocation1 [shape = 'u32[144,128]{1,0:T(1,128)}', space=vmem, size = 0x12000, scoped, tag = 'internal scratch']
  #allocation2 [shape = 'f32[1,1]{1,0:T(1,128)S(6)}', space=smem, size = 0x200, scoped, tag = 'scoped memory for tpu_custom_call.1']
  %s0 = inlined_call_operand.<no memory space> [shape: f32[1,1], index: 0, kind: input, shape index: {}]
  %s1 = inlined_call_operand.hbm [shape: f32[16,256], index: 1, kind: input, shape index: {}]
  %s2 = inlined_call_operand.hbm [shape: f32[16,256], index: 2, kind: input, shape index: {}]
  %s3 = inlined_call_operand.vmem [shape: f32[1,256], index: 3, kind: input, shape index: {}]
  %s4 = inlined_call_operand.vmem [shape: f32[16,1], index: 4, kind: output, shape index: {0}]
  %s5 = inlined_call_operand.hbm [shape: f32[1,1,256], index: 5, kind: output, shape index: {1}]
  %6 = xla_tuple %s4, %s5
  %s7 = sld [smem:[#allocation0]]
  $region42: #{tpu_custom_call.1} parent=0
    _
  %s9 = ssub.s32 1, %s7
  %s10 = scalar_select 0, %s9, %s7
  %11 = sst [smem:[#allocation2]] %s0
  $region1: #{tpu_custom_call.1} parent=0
    #allocation3 [shape = 'u8[16384]{0}', space=vmem, size = 0x4000, scoped, tag = 'input window, operand 1, single buffered']
    #allocation4 [shape = 's32[1]{0}', space=sflag, size = 0x4, scoped, tag = 'scoped memory for tpu_custom_call.1']
    #allocation5 [shape = 's32[1]{0}', space=sflag, size = 0x4, scoped, tag = 'scoped memory for tpu_custom_call.1']
    #allocation6 [shape = 'u8[16384]{0}', space=vmem, size = 0x4000, scoped, tag = 'input window, operand 2, single buffered']
    #allocation7 [shape = 's32[1]{0}', space=sflag, size = 0x4, scoped, tag = 'scoped memory for tpu_custom_call.1']
    #allocation8 [shape = 'u8[1024]{0}', space=vmem, size = 0x400, scoped, tag = 'output window, operand 1, single buffered']
    %12 = vsyncpa [#allocation4], 0
    %13 = vsyncpa [#allocation7], 0
    %14 = vsyncpa [#allocation5], 0
    // Predicated region
    $region2: #{tpu_custom_call.1} parent=1 // pred_check
      _
    $region3: #{tpu_custom_call.1} parent=1 // pred_check_branch
      %16 = sbr.rel (0) target = $region5
    $region4: #{tpu_custom_call.1} parent=1 // pred_region
      _
    $region5: #{tpu_custom_call.1} parent=1 // pred_fallthru
      _
    // Predicated region
    $region6: #{tpu_custom_call.1} parent=1 // pred_check
      _
    $region7: #{tpu_custom_call.1} parent=1 // pred_check_branch
      %18 = sbr.rel (0) target = $region9
    $region8: #{tpu_custom_call.1} parent=1 // pred_region
      %s20 = ssub.s32 512, 512
      %21 = vsyncadd [#allocation4], %s20
      %s22 = sshll.u32 [#allocation3], 4
      %s23 = int_to_ptr.vmem [resolvable:$true] %s22
      %28 = dma.hbm_to_vmem [thread:$0]  %s1, 512, %s23, [#allocation4], 256, 256, 16
    $region9: #{tpu_custom_call.1} parent=1 // pred_fallthru
      _
    // Predicated region
    $region10: #{tpu_custom_call.1} parent=1 // pred_check
      _
    $region11: #{tpu_custom_call.1} parent=1 // pred_check_branch
      %30 = sbr.rel (0) target = $region13
    $region12: #{tpu_custom_call.1} parent=1 // pred_region
      %s32 = ssub.s32 512, 512
      %33 = vsyncadd [#allocation7], %s32
      %s34 = sshll.u32 [#allocation6], 4
      %s35 = int_to_ptr.vmem [resolvable:$true] %s34
      %40 = dma.hbm_to_vmem [thread:$0]  %s2, 512, %s35, [#allocation7], 256, 256, 16
    $region13: #{tpu_custom_call.1} parent=1 // pred_fallthru
      _
    // Predicated region
    $region14: #{tpu_custom_call.1} parent=1 // pred_check
      _
    $region15: #{tpu_custom_call.1} parent=1 // pred_check_branch
      %42 = sbr.rel (0) target = $region17
    $region16: #{tpu_custom_call.1} parent=1 // pred_region
      _
    $region17: #{tpu_custom_call.1} parent=1 // pred_fallthru
      _
    // Predicated region
    $region18: #{tpu_custom_call.1} parent=1 // pred_check
      _
    $region19: #{tpu_custom_call.1} parent=1 // pred_check_branch
      %44 = sbr.rel (0) target = $region21
    $region20: #{tpu_custom_call.1} parent=1 // pred_region
      %45 = dma.done [#allocation4], 512
    $region21: #{tpu_custom_call.1} parent=1 // pred_fallthru
      _
    // Predicated region
    $region22: #{tpu_custom_call.1} parent=1 // pred_check
      _
    $region23: #{tpu_custom_call.1} parent=1 // pred_check_branch
      %47 = sbr.rel (0) target = $region25
    $region24: #{tpu_custom_call.1} parent=1 // pred_region
      %48 = dma.done [#allocation7], 512
    $region25: #{tpu_custom_call.1} parent=1 // pred_fallthru
      _
    %s49 = sld [smem:[#allocation2]]
    %v50 = vstv %s49
    %v51 = vrcp.pop %v50
    %s52 = vtos %v51
    %v53 = vld [vmem:[#allocation3] sm:$0xff]
    %v54 = vld [vmem:[#allocation3 + $0x8] sm:$0xff]
    %v55 = vld [vmem:[#allocation3 + $0x10] sm:$0xff]
    %v56 = vld [vmem:[#allocation3 + $0x18] sm:$0xff]
    %v57 = vld [vmem:[#allocation6] sm:$0xff]
    %v58 = vld [vmem:[#allocation6 + $0x8] sm:$0xff]
    %v59 = vld [vmem:[#allocation6 + $0x10] sm:$0xff]
    %v60 = vld [vmem:[#allocation6 + $0x18] sm:$0xff]
    %v61 = vld [vmem:[%s3] sm:$0x3]
    %v63 = vlaneseq
    %v64 = vshrl.u32 %v63, 7
    %v65 = vsub.s32 0, %v64
    %v66 = vrot.slane %v61, %v65
    %v67 = vlaneseq
    %v68 = vshrl.u32 %v67, 7
    %v69 = vsub.s32 1, %v68
    %v70 = vrot.slane %v61, %v69
    %v73 = vsub.f32 %v57, %v66
    %v74 = vsub.f32 %v58, %v70
    %v75 = vsub.f32 %v59, %v66
    %v76 = vsub.f32 %v60, %v70
    %v77 = vstv %s52
    %v78 = vmul.f32 %v73, %v77
    %v79 = vmul.f32 %v74, %v77
    %v80 = vmul.f32 %v75, %v77
    %v81 = vmul.f32 %v76, %v77
    %v82 = vmax.f32 %v78, %v79
    %83 = vmax.xlane.f32.xlu0 %v82
    %v84 = vpop.xlane.xlu0 %83
    %v85 = vmax.f32 %v80, %v81
    %86 = vmax.xlane.f32.xlu0 %v85
    %v87 = vpop.xlane.xlu0 %86
    %v88 = vsub.f32 %v78, %v84
    %v89 = vsub.f32 %v79, %v84
    %v90 = vsub.f32 %v80, %v87
    %v91 = vsub.f32 %v81, %v87
    %v92 = vmul.f32 %v88, 1.442695
    %v93 = vpow.pop %v92
    %v94 = vmul.f32 %v89, 1.442695
    %v95 = vpow.pop %v94
    %v96 = vmul.f32 %v90, 1.442695
    %v97 = vpow.pop %v96
    %v98 = vmul.f32 %v91, 1.442695
    %v99 = vpow.pop %v98
    %v100 = vadd.f32 %v93, %v95
    %101 = vadd.xlane.f32.xlu0 %v100
    %v102 = vpop.xlane.xlu0 %101
    %v103 = vadd.f32 %v97, %v99
    %104 = vadd.xlane.f32.xlu0 %v103
    %v105 = vpop.xlane.xlu0 %104
    %v106 = vmul.f32 %v53, 10.0
    %v107 = vmul.f32 %v54, 10.0
    %v108 = vmul.f32 %v55, 10.0
    %v109 = vmul.f32 %v56, 10.0
    %v110 = vmax.f32 %v106, %v107
    %111 = vmax.xlane.f32.xlu0 %v110
    %v112 = vpop.xlane.xlu0 %111
    %v113 = vmax.f32 %v108, %v109
    %114 = vmax.xlane.f32.xlu0 %v113
    %v115 = vpop.xlane.xlu0 %114
    %v116 = vsub.f32 %v106, %v112
    %v117 = vsub.f32 %v107, %v112
    %v118 = vsub.f32 %v108, %v115
    %v119 = vsub.f32 %v109, %v115
    %v120 = vmul.f32 %v116, 1.442695
    %v121 = vpow.pop %v120
    %v122 = vmul.f32 %v117, 1.442695
    %v123 = vpow.pop %v122
    %v124 = vmul.f32 %v118, 1.442695
    %v125 = vpow.pop %v124
    %v126 = vmul.f32 %v119, 1.442695
    %v127 = vpow.pop %v126
    %v128 = vadd.f32 %v121, %v123
    %129 = vadd.xlane.f32.xlu0 %v128
    %v130 = vpop.xlane.xlu0 %129
    %v131 = vadd.f32 %v125, %v127
    %132 = vadd.xlane.f32.xlu0 %v131
    %v133 = vpop.xlane.xlu0 %132
    %v134 = vlog2.pop %v130
    %v135 = vmul.f32 %v134, 0.6931472
    %v136 = vlog2.pop %v133
    %v137 = vmul.f32 %v136, 0.6931472
    %v138 = vsub.f32 %v116, %v135
    %v139 = vsub.f32 %v117, %v135
    %v140 = vsub.f32 %v118, %v137
    %v141 = vsub.f32 %v119, %v137
    %v142 = vmul.f32 %v93, %v138
    %v143 = vmul.f32 %v95, %v139
    %v144 = vmul.f32 %v97, %v140
    %v145 = vmul.f32 %v99, %v141
    %v146 = vadd.f32 %v142, %v143
    %147 = vadd.xlane.f32.xlu0 %v146
    %v148 = vpop.xlane.xlu0 %147
    %v149 = vadd.f32 %v144, %v145
    %150 = vadd.xlane.f32.xlu0 %v149
    %v151 = vpop.xlane.xlu0 %150
    %v152 = vrcp.pop %v102
    %v153 = vrcp.pop %v105
    %v154 = vmul.f32 %v148, %v152
    %v155 = vmul.f32 %v151, %v153
    %v156 = vsub.f32 0.0, %v154
    %v157 = vsub.f32 0.0, %v155
    %vm158 = vcmask 7168
    %159 = vst.msk [vmem:[%s4] sm:$0xff] %vm158, %v156
    %160 = vst.msk [vmem:[%s4 + $0x8] sm:$0xff] %vm158, %v157
    %s161 = smul.u32 0, 16
    %v162 = vlaneseq
    %v163 = vshrl.u32 %v162, 7
    %v164 = vadd.s32 %v163, 8
    %v165 = vstv %s161
    %v166 = vadd.s32 %v165, %v163
    %v167 = vadd.s32 %v165, %v164
    %vm168 = vcmp.lt.s32.totalorder %v166, 16
    %vm169 = vcmp.lt.s32.totalorder %v167, 16
    %v170 = vsel %vm168, 1, 0
    %v171 = vsel %vm169, 1, 0
    %vm172 = vcmp.eq.s32.totalorder %v170, 1
    %vm173 = vcmp.eq.s32.totalorder %v171, 1
    %v174 = vsel %vm172, %v57, 0.0
    %v175 = vsel %vm172, %v58, 0.0
    %v176 = vsel %vm173, %v59, 0.0
    %v177 = vsel %vm173, %v60, 0.0
    %v178 = vadd.f32 %v174, %v176
    %v179 = vrot.slane %v178, 4
    %v180 = vadd.f32 %v178, %v179
    %v181 = vrot.slane %v180, 2
    %v182 = vadd.f32 %v180, %v181
    %v183 = vrot.slane %v182, 1
    %v184 = vadd.f32 %v182, %v183
    %v185 = vadd.f32 %v175, %v177
    %v186 = vrot.slane %v185, 4
    %v187 = vadd.f32 %v185, %v186
    %v188 = vrot.slane %v187, 2
    %v189 = vadd.f32 %v187, %v188
    %v190 = vrot.slane %v189, 1
    %v191 = vadd.f32 %v189, %v190
    %v194 = vcombine.low %v184, %v191
    %v196 = vunpack.c.l.s4 1966171168
    %v197 = vunpack.c.0.s8 %v196
    %v198 = vlaneseq
    %v199 = vshrl.u32 %v198, 7
    %v200 = vsub.s32 %v197, %v199
    %v201 = vrot.slane %v194, %v200
    %v203 = vunpack.c.l.s4 1966171168
    %v204 = vunpack.c.0.s8 %v203
    %v205 = vlaneseq
    %v206 = vshrl.u32 %v205, 7
    %v207 = vsub.s32 %v204, %v206
    %v208 = vrot.slane %v201, %v207
    %v210 = vlaneseq
    %vm211 = vcmp.ge.s32.totalorder %v210, 0
    %vm212 = vcmp.lt.s32.totalorder %v210, 256
    %vm213 = vmand %vm211, %vm212
    %214 = vst.msk [vmem:[#allocation8] sm:$0x3] %vm213, %v208
    // Predicated region
    $region26: #{tpu_custom_call.1} parent=1 // pred_check
      _
    $region27: #{tpu_custom_call.1} parent=1 // pred_check_branch
      %216 = sbr.rel (0) target = $region29
    $region28: #{tpu_custom_call.1} parent=1 // pred_region
      _
    $region29: #{tpu_custom_call.1} parent=1 // pred_fallthru
      _
    // Predicated region
    $region30: #{tpu_custom_call.1} parent=1 // pred_check
      _
    $region31: #{tpu_custom_call.1} parent=1 // pred_check_branch
      %218 = sbr.rel (0) target = $region33
    $region32: #{tpu_custom_call.1} parent=1 // pred_region
      %s220 = ssub.s32 32, 32
      %221 = vsyncadd [#allocation5], %s220
      %s223 = sshll.u32 [#allocation8], 4
      %s224 = int_to_ptr.vmem [resolvable:$true] %s223
      %226 = dma.vmem_to_hbm [thread:$0]  %s224, 32, %s5, [#allocation5]
    $region33: #{tpu_custom_call.1} parent=1 // pred_fallthru
      _
    // Predicated region
    $region34: #{tpu_custom_call.1} parent=1 // pred_check
      _
    $region35: #{tpu_custom_call.1} parent=1 // pred_check_branch
      %228 = sbr.rel (0) target = $region37
    $region36: #{tpu_custom_call.1} parent=1 // pred_region
      _
    $region37: #{tpu_custom_call.1} parent=1 // pred_fallthru
      _
    // Predicated region
    $region38: #{tpu_custom_call.1} parent=1 // pred_check
      _
    $region39: #{tpu_custom_call.1} parent=1 // pred_check_branch
      %230 = sbr.rel (0) target = $region41
    $region40: #{tpu_custom_call.1} parent=1 // pred_region
      %231 = dma.done [#allocation5], 32
    $region41: #{tpu_custom_call.1} parent=1 // pred_fallthru
      _
    %232 = vsyncpa [#allocation4], 1
    %233 = vsyncpa [#allocation7], 1
    %234 = vsyncpa [#allocation5], 1

</llo_original>
